<compile_context>
chip_gen: v5e
topology: v5e:2x2
jax: 0.10.0
libtpu: 0.0.40
codegen_flags: <defaults>
</compile_context>

<pallas_src>
import jax
import jax.numpy as jnp
from jax.experimental import pallas as pl
from jax.experimental.pallas import tpu as pltpu

LANE = 128     # vreg lane width
SUBLANE = 8    # f32 sublanes per vreg


def linear_kernel(x_ref, w_ref, b_ref, o_ref):
    # x: (TB, D)   w: (D, Cp)  (pre-transposed, classes zero-padded to 128 lanes)
    # b: (1, Cp)   o: (TB, C)  (exact, unpadded output)
    x = x_ref[...]
    w = w_ref[...]
    acc = jnp.dot(x, w, preferred_element_type=jnp.float32)   # (TB, Cp) f32, MXU
    acc = acc + b_ref[...]
    c = o_ref.shape[-1]
    o_ref[...] = acc[:, :c].astype(o_ref.dtype)


def _round_up(n, m):
    return ((n + m - 1) // m) * m


def prepare_params(weight, bias):
    """One-time parameter prep.

    weight: (C, D) f32 (PyTorch nn.Linear layout) -> (D, Cp) transposed + padded
    bias:   (C,)   f32                            -> (1, Cp)
    Padded columns are zero; the kernel never stores them (output is (B, C)).
    """
    C, D = weight.shape
    Cp = _round_up(max(C, LANE), LANE)
    w_pad = jnp.zeros((D, Cp), weight.dtype).at[:, :C].set(weight.T)
    b_pad = jnp.zeros((1, Cp), bias.dtype).at[0, :C].set(bias)
    return w_pad, b_pad


def _pick_batch_tile(B, cap=1024):
    Bp = _round_up(B, SUBLANE)
    if Bp > cap:
        return cap
    if Bp > 512:
        # Big enough to care about v7x megacore: split into >= 2 grid steps.
        return _round_up((Bp + 1) // 2, SUBLANE)
    return Bp


def simple_nn_forward(x, w_pad, b_pad, num_classes):
    """x: (B, D) f32; w_pad: (D, Cp); b_pad: (1, Cp). Returns (B, num_classes)."""
    B, D = x.shape
    Cp = w_pad.shape[1]
    TB = _pick_batch_tile(B)

    return pl.pallas_call(
        linear_kernel,
        out_shape=jax.ShapeDtypeStruct((B, num_classes), x.dtype),
        grid=(pl.cdiv(B, TB),),
        in_specs=[
            pl.BlockSpec((TB, D), lambda i: (i, 0)),   # x, batch-tiled (ragged tail masked)
            pl.BlockSpec((D, Cp), lambda i: (0, 0)),   # weight, resident, MXU-ready layout
            pl.BlockSpec((1, Cp), lambda i: (0, 0)),   # bias, resident
        ],
        out_specs=pl.BlockSpec((TB, num_classes), lambda i: (i, 0)),
        compiler_params=pltpu.CompilerParams(
            dimension_semantics=("parallel",),          # shard batch on v7x's 2 TCs
        ),
    )(x, w_pad, b_pad)


if __name__ == "__main__":
    # Deterministic synthetic parameters and inputs (shapes per the module).
    input_size = 32
    num_classes = 4
    batch = 8

    key = jax.random.PRNGKey(0)
    kx, kw, kb = jax.random.split(key, 3)

    x = jax.random.normal(kx, (batch, input_size), dtype=jnp.float32)
    # PyTorch nn.Linear stores weight as (num_classes, input_size).
    weight = jax.random.normal(kw, (num_classes, input_size), dtype=jnp.float32) * 0.1
    bias = jax.random.normal(kb, (num_classes,), dtype=jnp.float32) * 0.1

    # One-time (init-style) layout prep of the parameters.
    w_pad, b_pad = prepare_params(weight, bias)

    out = simple_nn_forward(x, w_pad, b_pad, num_classes)
    out = jax.block_until_ready(out)

    # Reference check against plain JAX (same math as PyTorch's forward).
    ref = x @ weight.T + bias
    assert out.shape == (batch, num_classes)
    assert jnp.allclose(out, ref, atol=1e-5, rtol=1e-5)

    print("KERNEL_OK")
</pallas_src>

<mosaic_0001>
module attributes {stable_mosaic.version = 11 : i64} {
  func.func @linear_kernel(%arg0: i32, %arg1: memref<8x32xf32, #tpu.memory_space<vmem>>, %arg2: memref<32x128xf32, #tpu.memory_space<vmem>>, %arg3: memref<1x128xf32, #tpu.memory_space<vmem>>, %arg4: memref<8x4xf32, #tpu.memory_space<vmem>>) attributes {dimension_semantics = [#tpu.dimension_semantics<parallel>], iteration_bounds = array<i64: 1>, scalar_prefetch = 0 : i64, scratch_operands = 0 : i64, tpu.core_type = #tpu.core_type<tc>, window_params = [{transform_indices = @transform_0, window_bounds = array<i64: 8, 32>}, {pipeline_mode = #tpu.pipeline_mode<synchronous>, transform_indices = @transform_1, window_bounds = array<i64: 32, 128>}, {pipeline_mode = #tpu.pipeline_mode<synchronous>, transform_indices = @transform_2, window_bounds = array<i64: 1, 128>}, {transform_indices = @transform_3, window_bounds = array<i64: 8, 4>}]} {
    %c0 = arith.constant 0 : index
    %c0_0 = arith.constant 0 : index
    %0 = vector.load %arg1[%c0, %c0_0] : memref<8x32xf32, #tpu.memory_space<vmem>>, vector<8x32xf32>
    %c0_1 = arith.constant 0 : index
    %c0_2 = arith.constant 0 : index
    %1 = vector.load %arg2[%c0_1, %c0_2] : memref<32x128xf32, #tpu.memory_space<vmem>>, vector<32x128xf32>
    %cst = arith.constant dense<0.000000e+00> : vector<8x128xf32>
    %2 = tpu.matmul %0, %1, %cst {dimension_numbers = #tpu.dot_dimension_numbers<[1], [0], [0], [1], [0, 0, 1, 1], [], []>} : vector<8x32xf32>, vector<32x128xf32>, vector<8x128xf32> -> vector<8x128xf32>
    %c0_3 = arith.constant 0 : index
    %c0_4 = arith.constant 0 : index
    %3 = vector.load %arg3[%c0_3, %c0_4] : memref<1x128xf32, #tpu.memory_space<vmem>>, vector<1x128xf32>
    %4 = vector.broadcast %3 : vector<1x128xf32> to vector<8x128xf32>
    %5 = arith.addf %2, %4 : vector<8x128xf32>
    %6 = vector.extract_strided_slice %5 {offsets = [0, 0], sizes = [8, 4], strides = [1, 1]} : vector<8x128xf32> to vector<8x4xf32>
    %c0_5 = arith.constant 0 : index
    %c0_6 = arith.constant 0 : index
    %7 = vector.load %arg4[%c0_5, %c0_6] : memref<8x4xf32, #tpu.memory_space<vmem>>, vector<8x4xf32>
    tpu.vector_store %arg4[%c0_5, %c0_6], %6 {strides = array<i32>} : memref<8x4xf32, #tpu.memory_space<vmem>>, vector<8x4xf32>,
    return
  }
  func.func @transform_0(%arg0: i32) -> (i32, i32) {
    %c0_i32 = arith.constant 0 : i32
    %c0_i32_0 = arith.constant 0 : i32
    return %arg0, %c0_i32 : i32, i32
  }
  func.func @transform_1(%arg0: i32) -> (i32, i32) {
    %c0_i32 = arith.constant 0 : i32
    %c0_i32_0 = arith.constant 0 : i32
    %c0_i32_1 = arith.constant 0 : i32
    return %c0_i32, %c0_i32_0 : i32, i32
  }
  func.func @transform_2(%arg0: i32) -> (i32, i32) {
    %c0_i32 = arith.constant 0 : i32
    %c0_i32_0 = arith.constant 0 : i32
    %c0_i32_1 = arith.constant 0 : i32
    return %c0_i32, %c0_i32_0 : i32, i32
  }
  func.func @transform_3(%arg0: i32) -> (i32, i32) {
    %c0_i32 = arith.constant 0 : i32
    %c0_i32_0 = arith.constant 0 : i32
    return %arg0, %c0_i32 : i32, i32
  }
}

</mosaic_0001>

<llo_original>
// kernel: tpu_custom_call.1
$region0: #{tpu_custom_call.1}
  #allocation0 [shape = 'u32[]', space=smem, size = 0x4, offset = 0x4, fixed_abs, tag = 'smem constant byte address 0x4 - core index']
  #allocation1 [shape = 'u32[72,128]{1,0:T(1,128)}', space=vmem, size = 0x9000, scoped, tag = 'internal scratch']
  %s0 = inlined_call_operand.hbm [shape: f32[8,32], index: 0, kind: input, shape index: {}]
  %s1 = inlined_call_operand.hbm [shape: f32[32,128], index: 1, kind: input, shape index: {}]
  %s2 = inlined_call_operand.vmem [shape: f32[1,128], index: 2, kind: input, shape index: {}]
  %s3 = inlined_call_operand.vmem [shape: f32[8,4], index: 3, kind: output, shape index: {}]
  %s4 = sld [smem:[#allocation0]]
  $region30: #{tpu_custom_call.1} parent=0
    _
  %s6 = ssub.s32 1, %s4
  %s7 = scalar_select 0, %s6, %s4
  $region1: #{tpu_custom_call.1} parent=0
    #allocation2 [shape = 'u8[4096]{0}', space=vmem, size = 0x1000, scoped, tag = 'input window, operand 0, single buffered']
    #allocation3 [shape = 's32[1]{0}', space=sflag, size = 0x4, scoped, tag = 'scoped memory for tpu_custom_call.1']
    #allocation4 [shape = 'u8[16384]{0}', space=vmem, size = 0x4000, scoped, tag = 'input window, operand 1, single buffered']
    #allocation5 [shape = 's32[1]{0}', space=sflag, size = 0x4, scoped, tag = 'scoped memory for tpu_custom_call.1']
    %8 = vsyncpa [#allocation3], 0
    %9 = vsyncpa [#allocation5], 0
    // Predicated region
    $region2: #{tpu_custom_call.1} parent=1 // pred_check
      _
    $region3: #{tpu_custom_call.1} parent=1 // pred_check_branch
      %11 = sbr.rel (0) target = $region5
    $region4: #{tpu_custom_call.1} parent=1 // pred_region
      %13 = vsyncadd [#allocation3], 0
      %s15 = sshll.u32 %s0, 4
      %s16 = int_to_ptr.hbm [resolvable:$true] %s15
      %s17 = sshll.u32 [#allocation2], 4
      %s18 = int_to_ptr.vmem [resolvable:$true] %s17
      %20 = dma.hbm_to_vmem [thread:$0]  %s16, 128, %s18, [#allocation3]
    $region5: #{tpu_custom_call.1} parent=1 // pred_fallthru
      _
    // Predicated region
    $region6: #{tpu_custom_call.1} parent=1 // pred_check
      _
    $region7: #{tpu_custom_call.1} parent=1 // pred_check_branch
      %22 = sbr.rel (0) target = $region9
    $region8: #{tpu_custom_call.1} parent=1 // pred_region
      %24 = vsyncadd [#allocation5], 0
      %s25 = sshll.u32 %s1, 4
      %s26 = int_to_ptr.hbm [resolvable:$true] %s25
      %s27 = sshll.u32 [#allocation4], 4
      %s28 = int_to_ptr.vmem [resolvable:$true] %s27
      %33 = dma.hbm_to_vmem [thread:$0]  %s26, 512, %s28, [#allocation5], 128, 128, 8
    $region9: #{tpu_custom_call.1} parent=1 // pred_fallthru
      _
    // Predicated region
    $region10: #{tpu_custom_call.1} parent=1 // pred_check
      _
    $region11: #{tpu_custom_call.1} parent=1 // pred_check_branch
      %35 = sbr.rel (0) target = $region13
    $region12: #{tpu_custom_call.1} parent=1 // pred_region
      _
    $region13: #{tpu_custom_call.1} parent=1 // pred_fallthru
      _
    // Predicated region
    $region14: #{tpu_custom_call.1} parent=1 // pred_check
      _
    $region15: #{tpu_custom_call.1} parent=1 // pred_check_branch
      %37 = sbr.rel (0) target = $region17
    $region16: #{tpu_custom_call.1} parent=1 // pred_region
      %39 = dma.done [#allocation3], 128
    $region17: #{tpu_custom_call.1} parent=1 // pred_fallthru
      _
    // Predicated region
    $region18: #{tpu_custom_call.1} parent=1 // pred_check
      _
    $region19: #{tpu_custom_call.1} parent=1 // pred_check_branch
      %41 = sbr.rel (0) target = $region21
    $region20: #{tpu_custom_call.1} parent=1 // pred_region
      %43 = dma.done [#allocation5], 512
    $region21: #{tpu_custom_call.1} parent=1 // pred_fallthru
      _
    %v44 = vld [vmem:[#allocation2] sm:$0xff]
    %v45 = vld [vmem:[#allocation4] sm:$0xff]
    %v46 = vld [vmem:[#allocation4 + $0x8] sm:$0xff]
    %v47 = vld [vmem:[#allocation4 + $0x10] sm:$0xff]
    %v48 = vld [vmem:[#allocation4 + $0x18] sm:$0xff]
    %v49 = vld [vmem:[%s2] sm:$0x1]
    %v51 = vperm.slane %v49, 0
    %vm53 = vcmask 261120
    %v55 = vsel %vm53, %v44, 0
    %57 = vmatpush.msra.mxu0 0.0
    %58 = vmatpush.msra.mxu0 0.0
    %59 = vmatpush.msra.mxu0 0.0
    %60 = vmatpush.msra.mxu0 0.0
    %61 = vmatpush.msra.mxu0 0.0
    %62 = vmatpush.msra.mxu0 0.0
    %63 = vmatpush.msra.mxu0 0.0
    %64 = vmatpush.msra.mxu0 0.0
    %65 = vmatpush.msra.mxu0 0.0
    %66 = vmatpush.msra.mxu0 0.0
    %67 = vmatpush.msra.mxu0 0.0
    %68 = vmatpush.msra.mxu0 0.0
    %69 = vmatpush.msra.mxu0 %v48
    %70 = vmatpush.msra.mxu0 %v47
    %71 = vmatpush.msra.mxu0 %v46
    %72 = vmatpush.msra.mxu0 %v45
    %73 = vmatmul.f32.gmra.mxu0 %v55
    %v74 = vpop.f32.mrf.mxu0
    %v75 = vadd.f32 %v51, %v74
    %76 = vdwg.mxu0
    %vm77 = vcmask 31744
    %78 = vst.msk [vmem:[%s3] sm:$0xff] %vm77, %v75
    // Predicated region
    $region22: #{tpu_custom_call.1} parent=1 // pred_check
      _
    $region23: #{tpu_custom_call.1} parent=1 // pred_check_branch
      %80 = sbr.rel (0) target = $region25
    $region24: #{tpu_custom_call.1} parent=1 // pred_region
      _
    $region25: #{tpu_custom_call.1} parent=1 // pred_fallthru
      _
    // Predicated region
    $region26: #{tpu_custom_call.1} parent=1 // pred_check
      _
    $region27: #{tpu_custom_call.1} parent=1 // pred_check_branch
      %82 = sbr.rel (0) target = $region29
    $region28: #{tpu_custom_call.1} parent=1 // pred_region
      _
    $region29: #{tpu_custom_call.1} parent=1 // pred_fallthru
      _
    %83 = vsyncpa [#allocation3], 1
    %84 = vsyncpa [#allocation5], 1

</llo_original>
